<compile_context>
chip_gen: v6e
topology: v6e:2x2x1
jax: 0.10.0
libtpu: 0.0.40
codegen_flags: <defaults>
</compile_context>

<pallas_src>
from functools import partial

import jax
import jax.numpy as jnp
from jax.experimental import pallas as pl
from jax.experimental.pallas import tpu as pltpu


def _make_projection_kernel(output_type, range_clipping, output_step, inference):
    """Builds a Pallas kernel closing over the (static) module config."""

    def kernel(x_ref, w1_ref, b1_ref, w2_ref, b2_ref, o_ref):
        # ---- hidden = ReLU(x @ W1 + b1) ----------------------- MXU (f32 acc) + VPU
        h = jnp.dot(x_ref[...], w1_ref[...],
                    preferred_element_type=jnp.float32)
        h = jnp.maximum(h + b1_ref[...], 0.0)  # bias + ReLU in f32
        # TODO(synk): nn.Dropout(0.3) is identity in eval/inference mode; training-time
        #             stochastic masking (pltpu.prng_seed/prng_random_bits) not implemented.

        # ---- out = h @ W2 + b2 -------------------------------- MXU (f32 acc)
        y = jnp.dot(h.astype(w2_ref.dtype), w2_ref[...],
                    preferred_element_type=jnp.float32) + b2_ref[...]

        if output_type == "scalar":
            if range_clipping:
                y = jnp.tanh(y) * 2.0 + 3.0  # nn.Tanh() * 2 + 3
            o_ref[...] = y.astype(o_ref.dtype)
        else:  # categorical
            if inference:
                idx = jnp.argmax(y, axis=-1).astype(jnp.float32)[:, None]
                o_ref[...] = (idx * output_step + 1.0).astype(o_ref.dtype)
            else:
                o_ref[...] = y.astype(o_ref.dtype)

    return kernel


def _choose_tile_rows(in_dim, hidden_dim, out_cols, x_itemsize):
    """Largest row tile that keeps the per-tile working set under a budget
    that is safe on every generation (incl. v7x's smaller VMEM)."""
    budget = 12 * 1024 * 1024  # bytes of per-tile data (conservative)
    per_row = (2 * in_dim * x_itemsize        # x double-buffer
               + hidden_dim * 4               # f32 hidden intermediate
               + 2 * max(out_cols, 1) * 4)    # f32 output double-buffer
    tm = budget // max(per_row, 1)
    tm = int(min(tm, 4096))
    return max(8, (tm // 8) * 8)


def projection_forward(x, params, *, output_type, range_clipping=False,
                       output_step=1.0, inference=False,
                       compute_dtype=jnp.bfloat16, tile_rows=None):
    """x: [..., in_dim] float32. Returns torch-matching output shape."""
    w1, b1, w2, b2 = params  # w1:[in,hid] b1:[1,hid] w2:[hid,out] b2:[1,out]
    in_dim = x.shape[-1]
    lead = x.shape[:-1]
    rows = 1
    for d in lead:
        rows *= d

    hidden_dim = w1.shape[1]
    output_dim = w2.shape[1]
    if output_type == "categorical" and inference:
        out_cols = 1
    else:
        out_cols = output_dim

    # Memory-side / MXU-input dtype (bf16 halves HBM traffic); math stays f32.
    x2 = x.reshape(rows, in_dim).astype(compute_dtype)
    w1c = w1.astype(compute_dtype)
    w2c = w2.astype(compute_dtype)
    b1f = b1.reshape(1, hidden_dim).astype(jnp.float32)
    b2f = b2.reshape(1, output_dim).astype(jnp.float32)
    x_itemsize = jnp.dtype(compute_dtype).itemsize

    # ---- row tiling -------------------------------------------------------
    tm = tile_rows if tile_rows is not None else _choose_tile_rows(
        in_dim, hidden_dim, out_cols, x_itemsize)
    if rows <= tm:
        tm = rows            # single block (block row dim == full array rows)
        grid = (1,)
    else:
        tm = max(8, (tm // 8) * 8)
        grid = (pl.cdiv(rows, tm),)

    # ---- VMEM limit & cost estimate ---------------------------------------
    weight_bytes = (w1c.size * x_itemsize + w2c.size * x_itemsize
                    + b1f.size * 4 + b2f.size * 4)
    tile_bytes = (2 * tm * in_dim * x_itemsize      # x double-buffer
                  + tm * hidden_dim * 4             # f32 hidden intermediate
                  + 2 * tm * out_cols * 4)          # output double-buffer
    vmem_limit = int(min(32 * 1024 * 1024,
                         max(16 * 1024 * 1024, 2 * (tile_bytes + 2 * weight_bytes))))

    cost = pl.CostEstimate(
        flops=2 * rows * (in_dim * hidden_dim + hidden_dim * output_dim),
        transcendentals=rows if (output_type == "scalar" and range_clipping) else 0,
        bytes_accessed=int(x2.size * x_itemsize + weight_bytes + rows * out_cols * 4),
    )

    kernel = _make_projection_kernel(output_type, range_clipping,
                                     float(output_step), inference)

    out = pl.pallas_call(
        kernel,
        out_shape=jax.ShapeDtypeStruct((rows, out_cols), jnp.float32),
        grid=grid,
        in_specs=[
            pl.BlockSpec((tm, in_dim), lambda i: (i, 0)),            # x tile (streamed)
            pl.BlockSpec((in_dim, hidden_dim), lambda i: (0, 0)),    # W1 (resident)
            pl.BlockSpec((1, hidden_dim), lambda i: (0, 0)),         # b1 (resident)
            pl.BlockSpec((hidden_dim, output_dim), lambda i: (0, 0)),  # W2 (resident)
            pl.BlockSpec((1, output_dim), lambda i: (0, 0)),         # b2 (resident)
        ],
        out_specs=pl.BlockSpec((tm, out_cols), lambda i: (i, 0)),
        compiler_params=pltpu.CompilerParams(
            dimension_semantics=("parallel",),   # rows independent -> v7x 2-TC sharding
            vmem_limit_bytes=vmem_limit),
        cost_estimate=cost,
    )(x2, w1c, b1f, w2c, b2f)

    if output_type == "categorical" and inference:
        return out.reshape(lead)          # torch argmax drops the class dim
    return out.reshape(lead + (out_cols,))


def init_params(key, in_dim, hidden_dim, output_dim):
    """Deterministic synthetic parameters (same shapes as the torch module)."""
    k1, k2, k3, k4 = jax.random.split(key, 4)
    w1 = jax.random.normal(k1, (in_dim, hidden_dim), jnp.float32) * 0.1
    b1 = jax.random.normal(k2, (1, hidden_dim), jnp.float32) * 0.1
    w2 = jax.random.normal(k3, (hidden_dim, output_dim), jnp.float32) * 0.1
    b2 = jax.random.normal(k4, (1, output_dim), jnp.float32) * 0.1
    return w1, b1, w2, b2


def _reference(x, params, *, output_type, range_clipping, output_step, inference):
    w1, b1, w2, b2 = params
    h = jnp.maximum(x @ w1 + b1[0], 0.0)
    y = h @ w2 + b2[0]
    if output_type == "scalar":
        return jnp.tanh(y) * 2.0 + 3.0 if range_clipping else y
    if inference:
        return jnp.argmax(y, axis=-1).astype(jnp.float32) * output_step + 1.0
    return y


if __name__ == "__main__":
    key = jax.random.PRNGKey(0)
    kx, kp1, kp2, kx2 = jax.random.split(key, 4)

    batch, seq, in_dim, hidden_dim = 2, 8, 32, 32
    x = jax.random.normal(kx, (batch, seq, in_dim), jnp.float32)

    # --- scalar head with range clipping, bf16 memory-side inputs -----------
    p_scalar = init_params(kp1, in_dim, hidden_dim, 1)
    y_scalar = projection_forward(
        x, p_scalar, output_type="scalar", range_clipping=True)
    jax.block_until_ready(y_scalar)
    ref_scalar = _reference(x, p_scalar, output_type="scalar",
                            range_clipping=True, output_step=1.0, inference=False)
    assert y_scalar.shape == ref_scalar.shape
    assert jnp.allclose(y_scalar, ref_scalar, atol=5e-2, rtol=5e-2), "scalar head mismatch"

    # --- categorical head, inference (argmax * step + 1), exact f32 path ----
    n_classes, step = 5, 0.5
    p_cat = init_params(kp2, in_dim, hidden_dim, n_classes)
    y_cat = projection_forward(
        x, p_cat, output_type="categorical", output_step=step, inference=True,
        compute_dtype=jnp.float32)
    jax.block_until_ready(y_cat)
    ref_cat = _reference(x, p_cat, output_type="categorical",
                         range_clipping=False, output_step=step, inference=True)
    assert y_cat.shape == ref_cat.shape
    assert jnp.allclose(y_cat, ref_cat, atol=1e-5), "categorical head mismatch"

    # --- larger batch exercising the row-tiled path (grid>1, padded tail) ---
    xl = jax.random.normal(kx2, (4, 130, in_dim), jnp.float32)   # rows=520, TM=128
    y_tiled = projection_forward(
        xl, p_scalar, output_type="scalar", range_clipping=True,
        compute_dtype=jnp.float32, tile_rows=128)
    jax.block_until_ready(y_tiled)
    ref_tiled = _reference(xl, p_scalar, output_type="scalar",
                           range_clipping=True, output_step=1.0, inference=False)
    assert jnp.allclose(y_tiled, ref_tiled, atol=1e-4, rtol=1e-4), "tiled path mismatch"

    print("KERNEL_OK")
</pallas_src>

<mosaic_0001>
module attributes {stable_mosaic.version = 11 : i64} {
  func.func @kernel(%arg0: i32, %arg1: memref<16x32xbf16, #tpu.memory_space<vmem>>, %arg2: memref<32x32xbf16, #tpu.memory_space<vmem>>, %arg3: memref<1x32xf32, #tpu.memory_space<vmem>>, %arg4: memref<32x1xbf16, #tpu.memory_space<vmem>>, %arg5: memref<1x1xf32, #tpu.memory_space<vmem>>, %arg6: memref<16x1xf32, #tpu.memory_space<vmem>>) attributes {dimension_semantics = [#tpu.dimension_semantics<parallel>], iteration_bounds = array<i64: 1>, scalar_prefetch = 0 : i64, scratch_operands = 0 : i64, tpu.core_type = #tpu.core_type<tc>, window_params = [{transform_indices = @transform_0, window_bounds = array<i64: 16, 32>}, {pipeline_mode = #tpu.pipeline_mode<synchronous>, transform_indices = @transform_1, window_bounds = array<i64: 32, 32>}, {pipeline_mode = #tpu.pipeline_mode<synchronous>, transform_indices = @transform_2, window_bounds = array<i64: 1, 32>}, {pipeline_mode = #tpu.pipeline_mode<synchronous>, transform_indices = @transform_3, window_bounds = array<i64: 32, 1>}, {pipeline_mode = #tpu.pipeline_mode<synchronous>, transform_indices = @transform_4, window_bounds = array<i64: 1, 1>}, {transform_indices = @transform_5, window_bounds = array<i64: 16, 1>}]} {
    %c0 = arith.constant 0 : index
    %c0_0 = arith.constant 0 : index
    %0 = vector.load %arg1[%c0, %c0_0] : memref<16x32xbf16, #tpu.memory_space<vmem>>, vector<16x32xbf16>
    %c0_1 = arith.constant 0 : index
    %c0_2 = arith.constant 0 : index
    %1 = vector.load %arg2[%c0_1, %c0_2] : memref<32x32xbf16, #tpu.memory_space<vmem>>, vector<32x32xbf16>
    %cst = arith.constant dense<0.000000e+00> : vector<16x32xf32>
    %2 = tpu.matmul %0, %1, %cst {dimension_numbers = #tpu.dot_dimension_numbers<[1], [0], [0], [1], [0, 0, 1, 1], [], []>} : vector<16x32xbf16>, vector<32x32xbf16>, vector<16x32xf32> -> vector<16x32xf32>
    %c0_3 = arith.constant 0 : index
    %c0_4 = arith.constant 0 : index
    %3 = vector.load %arg3[%c0_3, %c0_4] : memref<1x32xf32, #tpu.memory_space<vmem>>, vector<1x32xf32>
    %4 = vector.broadcast %3 : vector<1x32xf32> to vector<16x32xf32>
    %5 = arith.addf %2, %4 : vector<16x32xf32>
    %cst_5 = arith.constant 0.000000e+00 : f32
    %6 = vector.broadcast %cst_5 : f32 to vector<16x32xf32>
    %7 = arith.maximumf %5, %6 : vector<16x32xf32>
    %8 = arith.truncf %7 : vector<16x32xf32> to vector<16x32xbf16>
    %c0_6 = arith.constant 0 : index
    %c0_7 = arith.constant 0 : index
    %9 = vector.load %arg4[%c0_6, %c0_7] : memref<32x1xbf16, #tpu.memory_space<vmem>>, vector<32x1xbf16>
    %cst_8 = arith.constant dense<0.000000e+00> : vector<16x1xf32>
    %10 = tpu.matmul %8, %9, %cst_8 {dimension_numbers = #tpu.dot_dimension_numbers<[1], [0], [0], [1], [0, 0, 1, 1], [], []>} : vector<16x32xbf16>, vector<32x1xbf16>, vector<16x1xf32> -> vector<16x1xf32>
    %c0_9 = arith.constant 0 : index
    %c0_10 = arith.constant 0 : index
    %11 = vector.load %arg5[%c0_9, %c0_10] : memref<1x1xf32, #tpu.memory_space<vmem>>, vector<1x1xf32>
    %12 = vector.broadcast %11 : vector<1x1xf32> to vector<16x1xf32>
    %13 = arith.addf %10, %12 : vector<16x1xf32>
    %14 = math.tanh %13 : vector<16x1xf32>
    %cst_11 = arith.constant 2.000000e+00 : f32
    %15 = vector.broadcast %cst_11 : f32 to vector<16x1xf32>
    %16 = arith.mulf %14, %15 : vector<16x1xf32>
    %cst_12 = arith.constant 3.000000e+00 : f32
    %17 = vector.broadcast %cst_12 : f32 to vector<16x1xf32>
    %18 = arith.addf %16, %17 : vector<16x1xf32>
    %c0_13 = arith.constant 0 : index
    %c0_14 = arith.constant 0 : index
    %19 = vector.load %arg6[%c0_13, %c0_14] : memref<16x1xf32, #tpu.memory_space<vmem>>, vector<16x1xf32>
    tpu.vector_store %arg6[%c0_13, %c0_14], %18 {strides = array<i32>} : memref<16x1xf32, #tpu.memory_space<vmem>>, vector<16x1xf32>,
    return
  }
  func.func @transform_0(%arg0: i32) -> (i32, i32) {
    %c0_i32 = arith.constant 0 : i32
    %c0_i32_0 = arith.constant 0 : i32
    return %arg0, %c0_i32 : i32, i32
  }
  func.func @transform_1(%arg0: i32) -> (i32, i32) {
    %c0_i32 = arith.constant 0 : i32
    %c0_i32_0 = arith.constant 0 : i32
    %c0_i32_1 = arith.constant 0 : i32
    return %c0_i32, %c0_i32_0 : i32, i32
  }
  func.func @transform_2(%arg0: i32) -> (i32, i32) {
    %c0_i32 = arith.constant 0 : i32
    %c0_i32_0 = arith.constant 0 : i32
    %c0_i32_1 = arith.constant 0 : i32
    return %c0_i32, %c0_i32_0 : i32, i32
  }
  func.func @transform_3(%arg0: i32) -> (i32, i32) {
    %c0_i32 = arith.constant 0 : i32
    %c0_i32_0 = arith.constant 0 : i32
    %c0_i32_1 = arith.constant 0 : i32
    return %c0_i32, %c0_i32_0 : i32, i32
  }
  func.func @transform_4(%arg0: i32) -> (i32, i32) {
    %c0_i32 = arith.constant 0 : i32
    %c0_i32_0 = arith.constant 0 : i32
    %c0_i32_1 = arith.constant 0 : i32
    return %c0_i32, %c0_i32_0 : i32, i32
  }
  func.func @transform_5(%arg0: i32) -> (i32, i32) {
    %c0_i32 = arith.constant 0 : i32
    %c0_i32_0 = arith.constant 0 : i32
    return %arg0, %c0_i32 : i32, i32
  }
}

</mosaic_0001>

<llo_original>
// kernel: tpu_custom_call.1
$region0: #{tpu_custom_call.1}
  #allocation0 [shape = 'u32[]', space=smem, size = 0x4, offset = 0x4, fixed_abs, tag = 'smem constant byte address 0x4 - core index']
  #allocation1 [shape = 'u32[144,128]{1,0:T(1,128)}', space=vmem, size = 0x12000, scoped, tag = 'internal scratch']
  #allocation2 [shape = 'f32[1,1]{1,0:T(1,128)S(1)}', space=vmem, size = 0x200, scoped, tag = 'scoped memory for tpu_custom_call.1']
  %s0 = inlined_call_operand.hbm [shape: bf16[16,32], index: 0, kind: input, shape index: {}]
  %s1 = inlined_call_operand.vmem [shape: bf16[32,32], index: 1, kind: input, shape index: {}]
  %s2 = inlined_call_operand.vmem [shape: f32[1,32], index: 2, kind: input, shape index: {}]
  %s3 = inlined_call_operand.vmem [shape: bf16[32,1], index: 3, kind: input, shape index: {}]
  %s4 = inlined_call_operand.<no memory space> [shape: f32[1,1], index: 4, kind: input, shape index: {}]
  %s5 = inlined_call_operand.vmem [shape: f32[16,1], index: 5, kind: output, shape index: {}]
  %s6 = sld [smem:[#allocation0]]
  $region34: #{tpu_custom_call.1} parent=0
    _
  %s8 = ssub.s32 1, %s6
  %s9 = scalar_select 0, %s8, %s6
  %v10 = vstv %s4
  %11 = vst [vmem:[#allocation2] sm:$0x1] %v10
  $region1: #{tpu_custom_call.1} parent=0
    #allocation3 [shape = 'u8[4096]{0}', space=vmem, size = 0x1000, scoped, tag = 'input window, operand 0, single buffered']
    #allocation4 [shape = 's32[1]{0}', space=sflag, size = 0x4, scoped, tag = 'scoped memory for tpu_custom_call.1']
    %12 = vsyncpa [#allocation4], 0
    // Predicated region
    $region2: #{tpu_custom_call.1} parent=1 // pred_check
      _
    $region3: #{tpu_custom_call.1} parent=1 // pred_check_branch
      %14 = sbr.rel (0) target = $region5
    $region4: #{tpu_custom_call.1} parent=1 // pred_region
      %s16 = ssub.s32 128, 128
      %17 = vsyncadd [#allocation4], %s16
      %s18 = sshll.u32 [#allocation3], 4
      %s19 = int_to_ptr.vmem [resolvable:$true] %s18
      %24 = dma.hbm_to_vmem [thread:$0]  %s0, 128, %s19, [#allocation4], 64, 64, 4
    $region5: #{tpu_custom_call.1} parent=1 // pred_fallthru
      _
    // Predicated region
    $region6: #{tpu_custom_call.1} parent=1 // pred_check
      _
    $region7: #{tpu_custom_call.1} parent=1 // pred_check_branch
      %26 = sbr.rel (0) target = $region9
    $region8: #{tpu_custom_call.1} parent=1 // pred_region
      _
    $region9: #{tpu_custom_call.1} parent=1 // pred_fallthru
      _
    // Predicated region
    $region10: #{tpu_custom_call.1} parent=1 // pred_check
      _
    $region11: #{tpu_custom_call.1} parent=1 // pred_check_branch
      %28 = sbr.rel (0) target = $region13
    $region12: #{tpu_custom_call.1} parent=1 // pred_region
      _
    $region13: #{tpu_custom_call.1} parent=1 // pred_fallthru
      _
    // Predicated region
    $region14: #{tpu_custom_call.1} parent=1 // pred_check
      _
    $region15: #{tpu_custom_call.1} parent=1 // pred_check_branch
      %30 = sbr.rel (0) target = $region17
    $region16: #{tpu_custom_call.1} parent=1 // pred_region
      _
    $region17: #{tpu_custom_call.1} parent=1 // pred_fallthru
      _
    // Predicated region
    $region18: #{tpu_custom_call.1} parent=1 // pred_check
      _
    $region19: #{tpu_custom_call.1} parent=1 // pred_check_branch
      %32 = sbr.rel (0) target = $region21
    $region20: #{tpu_custom_call.1} parent=1 // pred_region
      _
    $region21: #{tpu_custom_call.1} parent=1 // pred_fallthru
      _
    // Predicated region
    $region22: #{tpu_custom_call.1} parent=1 // pred_check
      _
    $region23: #{tpu_custom_call.1} parent=1 // pred_check_branch
      %34 = sbr.rel (0) target = $region25
    $region24: #{tpu_custom_call.1} parent=1 // pred_region
      %35 = dma.done [#allocation4], 128
    $region25: #{tpu_custom_call.1} parent=1 // pred_fallthru
      _
    %v37 = vld [vmem:[#allocation3] sm:$0xf]
    %v38 = vld [vmem:[#allocation3 + $0x4] sm:$0xf]
    %v39 = vld [vmem:[%s1] sm:$0xf]
    %v40 = vld [vmem:[%s1 + $0x4] sm:$0xf]
    %v41 = vld [vmem:[%s1 + $0x8] sm:$0xf]
    %v42 = vld [vmem:[%s1 + $0xc] sm:$0xf]
    %v43 = vld [vmem:[%s2] sm:$0x1]
    %v45 = vlaneseq
    %v46 = vshrl.u32 %v45, 7
    %v47 = vsub.s32 0, %v46
    %v48 = vrot.slane %v43, %v47
    %v52 = vunpack.c.l.b16 %v37
    %v53 = vunpack.c.l.b16 %v38
    %v54 = vpack.c.b16 %v53, %v52
    %v59 = vunpack.c.l.b16 %v39
    %v60 = vunpack.c.l.b16 %v40
    %v61 = vunpack.c.l.b16 %v41
    %v62 = vunpack.c.l.b16 %v42
    %v63 = vpack.c.b16 %v60, %v59
    %v64 = vpack.c.b16 %v62, %v61
    %vm67 = vcmask 261120
    %v69 = vsel %vm67, %v54, 0
    %71 = vmatprep.subr.bf16.mxu0 0
    %72 = vmatpush1.bf16.msra.mxu0 0
    %73 = vmatprep.subr.bf16.mxu0 0
    %74 = vmatpush1.bf16.msra.mxu0 0
    %75 = vmatprep.subr.bf16.mxu0 0
    %76 = vmatpush1.bf16.msra.mxu0 0
    %77 = vmatprep.subr.bf16.mxu0 0
    %78 = vmatpush1.bf16.msra.mxu0 0
    %79 = vmatprep.subr.bf16.mxu0 0
    %80 = vmatpush1.bf16.msra.mxu0 0
    %81 = vmatprep.subr.bf16.mxu0 0
    %82 = vmatpush1.bf16.msra.mxu0 0
    %83 = vmatprep.subr.bf16.mxu0 0
    %84 = vmatpush1.bf16.msra.mxu0 %v64
    %85 = vmatprep.subr.bf16.mxu0 0
    %86 = vmatpush1.bf16.msra.mxu0 %v63
    %87 = vmatprep.subr.bf16.mxu0 0
    %88 = vmatpush2.bf16.msra.mxu0 0
    %89 = vmatprep.subr.bf16.mxu0 0
    %90 = vmatpush2.bf16.msra.mxu0 0
    %91 = vmatprep.subr.bf16.mxu0 0
    %92 = vmatpush2.bf16.msra.mxu0 0
    %93 = vmatprep.subr.bf16.mxu0 0
    %94 = vmatpush2.bf16.msra.mxu0 0
    %95 = vmatprep.subr.bf16.mxu0 0
    %96 = vmatpush2.bf16.msra.mxu0 0
    %97 = vmatprep.subr.bf16.mxu0 0
    %98 = vmatpush2.bf16.msra.mxu0 0
    %99 = vmatprep.subr.bf16.mxu0 0
    %100 = vmatpush2.bf16.msra.mxu0 0
    %101 = vmatprep.subr.bf16.mxu0 0
    %102 = vmatpush2.bf16.msra.mxu0 0
    %103 = vmatprep.mubr.bf16.mxu0 0
    %104 = vmatmul.mubr.bf16.gmra.mxu0 %v69
    %v105 = vpop.f32.mrf.mxu0
    %v106 = vadd.f32 %v48, %v105
    %v107 = vpop.f32.mrf.mxu0
    %v108 = vpop.f32.mrf.mxu0
    %v109 = vadd.f32 %v48, %v108
    %v110 = vpop.f32.mrf.mxu0
    %111 = vdwg.mxu0
    %v112 = vmax.f32 %v106, 0.0
    %v113 = vmax.f32 %v109, 0.0
    %v114 = vpack.c.bf16 %v113, %v112
    %v115 = vld [vmem:[%s3] sm:$0xf]
    %v116 = vld [vmem:[%s3 + $0x4] sm:$0xf]
    %v117 = vld [vmem:[%s3 + $0x8] sm:$0xf]
    %v118 = vld [vmem:[%s3 + $0xc] sm:$0xf]
    %v119 = vld [vmem:[#allocation2] sm:$0x1]
    %v121 = vlaneseq
    %v122 = vshrl.u32 %v121, 7
    %v123 = vsub.s32 0, %v122
    %v124 = vrot.slane %v119, %v123
    %v130 = vunpack.c.l.b16 %v115
    %v131 = vunpack.c.l.b16 %v116
    %v132 = vunpack.c.l.b16 %v117
    %v133 = vunpack.c.l.b16 %v118
    %v134 = vpack.c.b16 %v131, %v130
    %v135 = vpack.c.b16 %v133, %v132
    %v139 = vsel %vm67, %v114, 0
    %141 = vmatprep.subr.bf16.mxu0 0
    %142 = vmatpush1.bf16.msra.mxu0 0
    %143 = vmatprep.subr.bf16.mxu0 0
    %144 = vmatpush1.bf16.msra.mxu0 0
    %145 = vmatprep.subr.bf16.mxu0 0
    %146 = vmatpush1.bf16.msra.mxu0 0
    %147 = vmatprep.subr.bf16.mxu0 0
    %148 = vmatpush1.bf16.msra.mxu0 0
    %149 = vmatprep.subr.bf16.mxu0 0
    %150 = vmatpush1.bf16.msra.mxu0 0
    %151 = vmatprep.subr.bf16.mxu0 0
    %152 = vmatpush1.bf16.msra.mxu0 0
    %153 = vmatprep.subr.bf16.mxu0 0
    %154 = vmatpush1.bf16.msra.mxu0 %v135
    %155 = vmatprep.subr.bf16.mxu0 0
    %156 = vmatpush1.bf16.msra.mxu0 %v134
    %157 = vmatprep.subr.bf16.mxu0 0
    %158 = vmatpush2.bf16.msra.mxu0 0
    %159 = vmatprep.subr.bf16.mxu0 0
    %160 = vmatpush2.bf16.msra.mxu0 0
    %161 = vmatprep.subr.bf16.mxu0 0
    %162 = vmatpush2.bf16.msra.mxu0 0
    %163 = vmatprep.subr.bf16.mxu0 0
    %164 = vmatpush2.bf16.msra.mxu0 0
    %165 = vmatprep.subr.bf16.mxu0 0
    %166 = vmatpush2.bf16.msra.mxu0 0
    %167 = vmatprep.subr.bf16.mxu0 0
    %168 = vmatpush2.bf16.msra.mxu0 0
    %169 = vmatprep.subr.bf16.mxu0 0
    %170 = vmatpush2.bf16.msra.mxu0 0
    %171 = vmatprep.subr.bf16.mxu0 0
    %172 = vmatpush2.bf16.msra.mxu0 0
    %173 = vmatprep.mubr.bf16.mxu0 0
    %174 = vmatmul.mubr.bf16.gmra.mxu0 %v139
    %v175 = vpop.f32.mrf.mxu0
    %v176 = vadd.f32 %v124, %v175
    %v177 = vpop.f32.mrf.mxu0
    %v178 = vpop.f32.mrf.mxu0
    %v179 = vadd.f32 %v124, %v178
    %v180 = vpop.f32.mrf.mxu0
    %181 = vdwg.mxu0
    %v182 = vtanh.pop %v176
    %v183 = vtanh.pop %v179
    %v184 = vmul.f32 %v182, 2.0
    %v185 = vmul.f32 %v183, 2.0
    %v186 = vadd.f32 %v184, 3.0
    %v187 = vadd.f32 %v185, 3.0
    %vm188 = vcmask 7168
    %189 = vst.msk [vmem:[%s5] sm:$0xff] %vm188, %v186
    %190 = vst.msk [vmem:[%s5 + $0x8] sm:$0xff] %vm188, %v187
    // Predicated region
    $region26: #{tpu_custom_call.1} parent=1 // pred_check
      _
    $region27: #{tpu_custom_call.1} parent=1 // pred_check_branch
      %192 = sbr.rel (0) target = $region29
    $region28: #{tpu_custom_call.1} parent=1 // pred_region
      _
    $region29: #{tpu_custom_call.1} parent=1 // pred_fallthru
      _
    // Predicated region
    $region30: #{tpu_custom_call.1} parent=1 // pred_check
      _
    $region31: #{tpu_custom_call.1} parent=1 // pred_check_branch
      %194 = sbr.rel (0) target = $region33
    $region32: #{tpu_custom_call.1} parent=1 // pred_region
      _
    $region33: #{tpu_custom_call.1} parent=1 // pred_fallthru
      _
    %195 = vsyncpa [#allocation4], 1

</llo_original>
